<compile_context>
chip_gen: v6e
topology: v6e:2x2x1
jax: 0.10.0
libtpu: 0.0.40
codegen_flags: <defaults>
</compile_context>

<pallas_src>
import jax
import jax.numpy as jnp
from jax.experimental import pallas as pl
from jax.experimental.pallas import tpu as pltpu

BN_EPS = 1e-5


def _elu_expm1(y):
    """ELU(alpha=1) with PyTorch expm1 numerics on the negative branch.

    Emulates expm1 with exp + a cubic Taylor guard for tiny |y| (avoids the
    exp(y)-1 cancellation expm1 exists to fix) using only primitives that are
    guaranteed to lower in Mosaic on all TPU generations.
    """
    yn = jnp.minimum(y, 0.0)
    taylor = yn * (1.0 + yn * (0.5 + yn * (1.0 / 6.0)))        # y + y^2/2 + y^3/6
    em1 = jnp.where(yn > -0.03, taylor, jnp.exp(yn) - 1.0)
    return jnp.where(y > 0.0, y, em1)


def conv_bn_elu_kernel(w_ref, p_ref, g_ref, b_ref, o_ref):
    """Fused conv-as-matmul -> BatchNorm2d(train) -> ELU, channel-major.

      w_ref: (Cout, K)  bf16  flattened conv weight, K = Cin*KH*KW
      p_ref: (K, M)     bf16  im2col patches, M = N*Ho*Wo (lane axis)
      g_ref: (Cout, 1)  f32   BN gamma
      b_ref: (Cout, 1)  f32   BN beta
      o_ref: (Cout, M)  f32   ELU(BN(conv)) output (lane-dense)
    """
    # Conv on the MXU, f32 accumulation.
    acc = jnp.dot(w_ref[...], p_ref[...], preferred_element_type=jnp.float32)

    # BatchNorm2d training-mode stats over N*H*W (the lane axis), biased
    # variance, eps=1e-5 -- PyTorch normalization semantics.
    mean = jnp.mean(acc, axis=-1, keepdims=True)               # (Cout, 1)
    cent = acc - mean
    var = jnp.mean(cent * cent, axis=-1, keepdims=True)        # (Cout, 1)

    # Fold normalize + affine into one per-channel scale/shift so the
    # per-element application is a single mul + add.
    scale = g_ref[...] * jax.lax.rsqrt(var + BN_EPS)           # (Cout, 1)
    shift = b_ref[...] - mean * scale
    y = acc * scale + shift

    o_ref[...] = _elu_expm1(y).astype(o_ref.dtype)


def bn_conv2d_elu(x_nchw, weight, gamma, beta, stride=(1, 1), padding=(1, 1),
                  dilation=(1, 1), groups=1):
    """Forward of BN_Conv2d: ELU(BatchNorm2d(Conv2d(x, bias=False))).

    Training-mode BN (batch statistics).
    # TODO(synk): BatchNorm running_mean/running_var buffers are not tracked
    # (only the training-mode forward normalization is reproduced).
    """
    assert groups == 1  # TODO(synk): grouped conv not implemented in this kernel
    N, Cin, H, W = x_nchw.shape
    Cout, Cin_w, KH, KW = weight.shape
    assert Cin_w == Cin
    sh, sw = stride
    ph, pw = padding
    dh, dw = dilation

    Ho = (H + 2 * ph - dh * (KH - 1) - 1) // sh + 1
    Wo = (W + 2 * pw - dw * (KW - 1) - 1) // sw + 1
    K = Cin * KH * KW
    M = N * Ho * Wo

    # im2col in one XLA op, emitted already channel-major as (K, N, Ho, Wo);
    # the (K, M) patch matrix is then a trivial trailing-dim flatten.  The K
    # ordering is (Cin, KH, KW) -- matches weight.reshape(Cout, Cin*KH*KW).
    patches = jax.lax.conv_general_dilated_patches(
        x_nchw,
        filter_shape=(KH, KW),
        window_strides=(sh, sw),
        padding=((ph, ph), (pw, pw)),
        rhs_dilation=(dh, dw),
        dimension_numbers=("NCHW", "OIHW", "CNHW"),
    )                                                          # (K, N, Ho, Wo)
    patches_km = patches.reshape(K, M).astype(jnp.bfloat16)
    w_ck = weight.reshape(Cout, K).astype(jnp.bfloat16)

    # TODO(synk): for large M (esp. v7x 64 MiB VMEM / 2 TCs), tile M over a
    # "parallel" grid with a two-pass BN (sum/sumsq accumulation pass, then
    # normalize+ELU pass) instead of this single full-block call.
    out_cm = pl.pallas_call(
        conv_bn_elu_kernel,
        out_shape=jax.ShapeDtypeStruct((Cout, M), jnp.float32),
        grid=(1,),
        in_specs=[
            pl.BlockSpec((Cout, K), lambda i: (0, 0)),
            pl.BlockSpec((K, M), lambda i: (0, 0)),
            pl.BlockSpec((Cout, 1), lambda i: (0, 0)),
            pl.BlockSpec((Cout, 1), lambda i: (0, 0)),
        ],
        out_specs=pl.BlockSpec((Cout, M), lambda i: (0, 0)),
        compiler_params=pltpu.CompilerParams(
            dimension_semantics=("arbitrary",)),
    )(w_ck, patches_km,
      gamma.reshape(Cout, 1).astype(jnp.float32),
      beta.reshape(Cout, 1).astype(jnp.float32))

    # (Cout, N*Ho*Wo) -> (N, Cout, Ho, Wo)
    return out_cm.reshape(Cout, N, Ho, Wo).transpose(1, 0, 2, 3)


if __name__ == "__main__":
    key = jax.random.PRNGKey(0)
    k_x, k_w, k_g, k_b = jax.random.split(key, 4)

    # Module config: BN_Conv2d(4, 8, kernel_size=3, stride=1, padding=1)
    N, Cin, H, W = 2, 4, 16, 16
    Cout, KH, KW = 8, 3, 3

    x = jax.random.normal(k_x, (N, Cin, H, W), dtype=jnp.float32)
    weight = jax.random.normal(k_w, (Cout, Cin, KH, KW), dtype=jnp.float32) * 0.1
    gamma = 1.0 + 0.1 * jax.random.normal(k_g, (Cout,), dtype=jnp.float32)
    beta = 0.1 * jax.random.normal(k_b, (Cout,), dtype=jnp.float32)

    out = bn_conv2d_elu(x, weight, gamma, beta,
                        stride=(1, 1), padding=(1, 1), dilation=(1, 1), groups=1)
    jax.block_until_ready(out)
    assert out.shape == (N, Cout, H, W)

    # Pure-JAX f32 reference (Conv -> BN(train) -> ELU).  Loose tolerance:
    # kernel matmul inputs are bf16, everything else is f32.
    conv = jax.lax.conv_general_dilated(
        x, weight, window_strides=(1, 1), padding=((1, 1), (1, 1)),
        rhs_dilation=(1, 1), dimension_numbers=("NCHW", "OIHW", "NCHW"))
    mu = conv.mean(axis=(0, 2, 3), keepdims=True)
    var = conv.var(axis=(0, 2, 3), keepdims=True)   # biased, like PyTorch BN
    bn = (conv - mu) / jnp.sqrt(var + BN_EPS)
    bn = bn * gamma.reshape(1, -1, 1, 1) + beta.reshape(1, -1, 1, 1)
    ref = jnp.where(bn > 0, bn, jnp.expm1(bn))
    max_err = float(jnp.max(jnp.abs(out - ref)))
    assert max_err < 0.1, f"max abs error {max_err}"

    print("KERNEL_OK")
</pallas_src>

<mosaic_0001>
module attributes {stable_mosaic.version = 11 : i64} {
  func.func @conv_bn_elu_kernel(%arg0: i32, %arg1: memref<8x36xbf16, #tpu.memory_space<vmem>>, %arg2: memref<36x512xbf16, #tpu.memory_space<vmem>>, %arg3: memref<8x1xf32, #tpu.memory_space<vmem>>, %arg4: memref<8x1xf32, #tpu.memory_space<vmem>>, %arg5: memref<8x512xf32, #tpu.memory_space<vmem>>) attributes {dimension_semantics = [#tpu.dimension_semantics<arbitrary>], iteration_bounds = array<i64: 1>, scalar_prefetch = 0 : i64, scratch_operands = 0 : i64, tpu.core_type = #tpu.core_type<tc>, window_params = [{pipeline_mode = #tpu.pipeline_mode<synchronous>, transform_indices = @transform_0, window_bounds = array<i64: 8, 36>}, {pipeline_mode = #tpu.pipeline_mode<synchronous>, transform_indices = @transform_1, window_bounds = array<i64: 36, 512>}, {pipeline_mode = #tpu.pipeline_mode<synchronous>, transform_indices = @transform_2, window_bounds = array<i64: 8, 1>}, {pipeline_mode = #tpu.pipeline_mode<synchronous>, transform_indices = @transform_3, window_bounds = array<i64: 8, 1>}, {pipeline_mode = #tpu.pipeline_mode<synchronous>, transform_indices = @transform_4, window_bounds = array<i64: 8, 512>}]} {
    %c0 = arith.constant 0 : index
    %c0_0 = arith.constant 0 : index
    %0 = vector.load %arg1[%c0, %c0_0] : memref<8x36xbf16, #tpu.memory_space<vmem>>, vector<8x36xbf16>
    %c0_1 = arith.constant 0 : index
    %c0_2 = arith.constant 0 : index
    %1 = vector.load %arg2[%c0_1, %c0_2] : memref<36x512xbf16, #tpu.memory_space<vmem>>, vector<36x512xbf16>
    %cst = arith.constant dense<0.000000e+00> : vector<8x512xf32>
    %2 = tpu.matmul %0, %1, %cst {dimension_numbers = #tpu.dot_dimension_numbers<[1], [0], [0], [1], [0, 0, 1, 1], [], []>} : vector<8x36xbf16>, vector<36x512xbf16>, vector<8x512xf32> -> vector<8x512xf32>
    %cst_3 = arith.constant dense<0.000000e+00> : vector<8xf32>
    %3 = vector.multi_reduction <add>, %2, %cst_3 [1] : vector<8x512xf32> to vector<8xf32>
    %4 = vector.shape_cast %3 : vector<8xf32> to vector<8x1xf32>
    %cst_4 = arith.constant 5.120000e+02 : f32
    %5 = vector.broadcast %cst_4 : f32 to vector<8x1xf32>
    %6 = arith.divf %4, %5 : vector<8x1xf32>
    %7 = vector.broadcast %6 : vector<8x1xf32> to vector<8x512xf32>
    %8 = arith.subf %2, %7 : vector<8x512xf32>
    %9 = arith.mulf %8, %8 : vector<8x512xf32>
    %cst_5 = arith.constant dense<0.000000e+00> : vector<8xf32>
    %10 = vector.multi_reduction <add>, %9, %cst_5 [1] : vector<8x512xf32> to vector<8xf32>
    %11 = vector.shape_cast %10 : vector<8xf32> to vector<8x1xf32>
    %cst_6 = arith.constant 5.120000e+02 : f32
    %12 = vector.broadcast %cst_6 : f32 to vector<8x1xf32>
    %13 = arith.divf %11, %12 : vector<8x1xf32>
    %c0_7 = arith.constant 0 : index
    %c0_8 = arith.constant 0 : index
    %14 = vector.load %arg3[%c0_7, %c0_8] : memref<8x1xf32, #tpu.memory_space<vmem>>, vector<8x1xf32>
    %cst_9 = arith.constant 9.99999974E-6 : f32
    %15 = vector.broadcast %cst_9 : f32 to vector<8x1xf32>
    %16 = arith.addf %13, %15 : vector<8x1xf32>
    %17 = math.rsqrt %16 : vector<8x1xf32>
    %18 = arith.mulf %14, %17 : vector<8x1xf32>
    %c0_10 = arith.constant 0 : index
    %c0_11 = arith.constant 0 : index
    %19 = vector.load %arg4[%c0_10, %c0_11] : memref<8x1xf32, #tpu.memory_space<vmem>>, vector<8x1xf32>
    %20 = arith.mulf %6, %18 : vector<8x1xf32>
    %21 = arith.subf %19, %20 : vector<8x1xf32>
    %22 = vector.broadcast %18 : vector<8x1xf32> to vector<8x512xf32>
    %23 = arith.mulf %2, %22 : vector<8x512xf32>
    %24 = vector.broadcast %21 : vector<8x1xf32> to vector<8x512xf32>
    %25 = arith.addf %23, %24 : vector<8x512xf32>
    %cst_12 = arith.constant 0.000000e+00 : f32
    %26 = vector.broadcast %cst_12 : f32 to vector<8x512xf32>
    %27 = arith.minimumf %25, %26 : vector<8x512xf32>
    %cst_13 = arith.constant 0.166666672 : f32
    %28 = vector.broadcast %cst_13 : f32 to vector<8x512xf32>
    %29 = arith.mulf %27, %28 : vector<8x512xf32>
    %cst_14 = arith.constant 5.000000e-01 : f32
    %30 = vector.broadcast %cst_14 : f32 to vector<8x512xf32>
    %31 = arith.addf %30, %29 : vector<8x512xf32>
    %32 = arith.mulf %27, %31 : vector<8x512xf32>
    %cst_15 = arith.constant 1.000000e+00 : f32
    %33 = vector.broadcast %cst_15 : f32 to vector<8x512xf32>
    %34 = arith.addf %33, %32 : vector<8x512xf32>
    %35 = arith.mulf %27, %34 : vector<8x512xf32>
    %cst_16 = arith.constant -3.000000e-02 : f32
    %36 = vector.broadcast %cst_16 : f32 to vector<8x512xf32>
    %37 = arith.cmpf ogt, %27, %36 : vector<8x512xf32>
    %38 = math.exp %27 : vector<8x512xf32>
    %cst_17 = arith.constant 1.000000e+00 : f32
    %39 = vector.broadcast %cst_17 : f32 to vector<8x512xf32>
    %40 = arith.subf %38, %39 : vector<8x512xf32>
    %41 = arith.select %37, %35, %40 : vector<8x512xi1>, vector<8x512xf32>
    %cst_18 = arith.constant 0.000000e+00 : f32
    %42 = vector.broadcast %cst_18 : f32 to vector<8x512xf32>
    %43 = arith.cmpf ogt, %25, %42 : vector<8x512xf32>
    %44 = arith.select %43, %25, %41 : vector<8x512xi1>, vector<8x512xf32>
    %c0_19 = arith.constant 0 : index
    %c0_20 = arith.constant 0 : index
    %45 = vector.load %arg5[%c0_19, %c0_20] : memref<8x512xf32, #tpu.memory_space<vmem>>, vector<8x512xf32>
    tpu.vector_store %arg5[%c0_19, %c0_20], %44 {strides = array<i32>} : memref<8x512xf32, #tpu.memory_space<vmem>>, vector<8x512xf32>,
    return
  }
  func.func @transform_0(%arg0: i32) -> (i32, i32) {
    %c0_i32 = arith.constant 0 : i32
    %c0_i32_0 = arith.constant 0 : i32
    %c0_i32_1 = arith.constant 0 : i32
    return %c0_i32, %c0_i32_0 : i32, i32
  }
  func.func @transform_1(%arg0: i32) -> (i32, i32) {
    %c0_i32 = arith.constant 0 : i32
    %c0_i32_0 = arith.constant 0 : i32
    %c0_i32_1 = arith.constant 0 : i32
    return %c0_i32, %c0_i32_0 : i32, i32
  }
  func.func @transform_2(%arg0: i32) -> (i32, i32) {
    %c0_i32 = arith.constant 0 : i32
    %c0_i32_0 = arith.constant 0 : i32
    %c0_i32_1 = arith.constant 0 : i32
    return %c0_i32, %c0_i32_0 : i32, i32
  }
  func.func @transform_3(%arg0: i32) -> (i32, i32) {
    %c0_i32 = arith.constant 0 : i32
    %c0_i32_0 = arith.constant 0 : i32
    %c0_i32_1 = arith.constant 0 : i32
    return %c0_i32, %c0_i32_0 : i32, i32
  }
  func.func @transform_4(%arg0: i32) -> (i32, i32) {
    %c0_i32 = arith.constant 0 : i32
    %c0_i32_0 = arith.constant 0 : i32
    %c0_i32_1 = arith.constant 0 : i32
    return %c0_i32, %c0_i32_0 : i32, i32
  }
}

</mosaic_0001>

<llo_original>
// kernel: tpu_custom_call.1
$region0: #{tpu_custom_call.1}
  #allocation0 [shape = 'u32[]', space=smem, size = 0x4, offset = 0x4, fixed_abs, tag = 'smem constant byte address 0x4 - core index']
  #allocation1 [shape = 'u32[144,128]{1,0:T(1,128)}', space=vmem, size = 0x12000, scoped, tag = 'internal scratch']
  %s0 = inlined_call_operand.vmem [shape: bf16[8,36], index: 0, kind: input, shape index: {}]
  %s1 = inlined_call_operand.hbm [shape: bf16[36,512], index: 1, kind: input, shape index: {}]
  %s2 = inlined_call_operand.vmem [shape: f32[8,1], index: 2, kind: input, shape index: {}]
  %s3 = inlined_call_operand.vmem [shape: f32[8,1], index: 3, kind: input, shape index: {}]
  %s4 = inlined_call_operand.hbm [shape: f32[8,512], index: 4, kind: output, shape index: {}]
  %s5 = sld [smem:[#allocation0]]
  $region30: #{tpu_custom_call.1} parent=0
    _
  %s7 = ssub.s32 1, %s5
  %s8 = scalar_select 0, %s7, %s5
  $region1: #{tpu_custom_call.1} parent=0
    #allocation2 [shape = 'u8[40960]{0}', space=vmem, size = 0xa000, scoped, tag = 'input window, operand 1, single buffered']
    #allocation3 [shape = 's32[1]{0}', space=sflag, size = 0x4, scoped, tag = 'scoped memory for tpu_custom_call.1']
    #allocation4 [shape = 's32[1]{0}', space=sflag, size = 0x4, scoped, tag = 'scoped memory for tpu_custom_call.1']
    #allocation5 [shape = 'u8[16384]{0}', space=vmem, size = 0x4000, scoped, tag = 'output window, operand 0, single buffered']
    %9 = vsyncpa [#allocation3], 0
    %10 = vsyncpa [#allocation4], 0
    // Predicated region
    $region2: #{tpu_custom_call.1} parent=1 // pred_check
      _
    $region3: #{tpu_custom_call.1} parent=1 // pred_check_branch
      %12 = sbr.rel (0) target = $region5
    $region4: #{tpu_custom_call.1} parent=1 // pred_region
      _
    $region5: #{tpu_custom_call.1} parent=1 // pred_fallthru
      _
    // Predicated region
    $region6: #{tpu_custom_call.1} parent=1 // pred_check
      _
    $region7: #{tpu_custom_call.1} parent=1 // pred_check_branch
      %14 = sbr.rel (0) target = $region9
    $region8: #{tpu_custom_call.1} parent=1 // pred_region
      %s16 = ssub.s32 1280, 1280
      %17 = vsyncadd [#allocation3], %s16
      %s18 = sshll.u32 [#allocation2], 4
      %s19 = int_to_ptr.vmem [resolvable:$true] %s18
      %24 = dma.hbm_to_vmem [thread:$0]  %s1, 1280, %s19, [#allocation3], 256, 256, 16
    $region9: #{tpu_custom_call.1} parent=1 // pred_fallthru
      _
    // Predicated region
    $region10: #{tpu_custom_call.1} parent=1 // pred_check
      _
    $region11: #{tpu_custom_call.1} parent=1 // pred_check_branch
      %26 = sbr.rel (0) target = $region13
    $region12: #{tpu_custom_call.1} parent=1 // pred_region
      _
    $region13: #{tpu_custom_call.1} parent=1 // pred_fallthru
      _
    // Predicated region
    $region14: #{tpu_custom_call.1} parent=1 // pred_check
      _
    $region15: #{tpu_custom_call.1} parent=1 // pred_check_branch
      %28 = sbr.rel (0) target = $region17
    $region16: #{tpu_custom_call.1} parent=1 // pred_region
      _
    $region17: #{tpu_custom_call.1} parent=1 // pred_fallthru
      _
    // Predicated region
    $region18: #{tpu_custom_call.1} parent=1 // pred_check
      _
    $region19: #{tpu_custom_call.1} parent=1 // pred_check_branch
      %30 = sbr.rel (0) target = $region21
    $region20: #{tpu_custom_call.1} parent=1 // pred_region
      %31 = dma.done [#allocation3], 1280
    $region21: #{tpu_custom_call.1} parent=1 // pred_fallthru
      _
    %v33 = vld [vmem:[%s0] sm:$0xf]
    %v34 = vld [vmem:[#allocation2] sm:$0xff]
    %v35 = vld [vmem:[#allocation2 + $0x8] sm:$0xff]
    %v36 = vld [vmem:[#allocation2 + $0x10] sm:$0xff]
    %v37 = vld [vmem:[#allocation2 + $0x18] sm:$0xff]
    %v38 = vld [vmem:[#allocation2 + $0x20] sm:$0xff]
    %v39 = vld [vmem:[#allocation2 + $0x28] sm:$0xff]
    %v40 = vld [vmem:[#allocation2 + $0x30] sm:$0xff]
    %v41 = vld [vmem:[#allocation2 + $0x38] sm:$0xff]
    %v42 = vld [vmem:[#allocation2 + $0x40] sm:$0x33]
    %v43 = vld [vmem:[#allocation2 + $0x48] sm:$0x33]
    %v54 = vunpack.c.l.b16 %v34
    %v55 = vunpack.c.h.b16 %v34
    %v56 = vunpack.c.l.b16 %v35
    %v57 = vunpack.c.h.b16 %v35
    %v58 = vunpack.c.l.b16 %v36
    %v59 = vunpack.c.h.b16 %v36
    %v60 = vunpack.c.l.b16 %v37
    %v61 = vunpack.c.h.b16 %v37
    %v62 = vunpack.c.l.b16 %v38
    %v63 = vunpack.c.h.b16 %v38
    %v64 = vunpack.c.l.b16 %v39
    %v65 = vunpack.c.h.b16 %v39
    %v66 = vunpack.c.l.b16 %v40
    %v67 = vunpack.c.h.b16 %v40
    %v68 = vunpack.c.l.b16 %v41
    %v69 = vunpack.c.h.b16 %v41
    %v70 = vunpack.c.l.b16 %v42
    %v71 = vunpack.c.h.b16 %v42
    %v72 = vunpack.c.l.b16 %v43
    %v73 = vunpack.c.h.b16 %v43
    %v74 = vpack.c.b16 %v58, %v54
    %v75 = vpack.c.b16 %v59, %v55
    %v76 = vpack.c.b16 %v60, %v56
    %v77 = vpack.c.b16 %v61, %v57
    %v78 = vpack.c.b16 %v66, %v62
    %v79 = vpack.c.b16 %v67, %v63
    %v80 = vpack.c.b16 %v68, %v64
    %v81 = vpack.c.b16 %v69, %v65
    %v82 = vpack.c.b16 %v70, %v70
    %v83 = vpack.c.b16 %v71, %v71
    %v84 = vpack.c.b16 %v72, %v72
    %v85 = vpack.c.b16 %v73, %v73
    %vm94 = vcmask 293888
    %v96 = vsel %vm94, %v33, 0
    %vm98 = vcmask 1041408
    %v100 = vsel %vm98, %v82, 0
    %v103 = vsel %vm98, %v83, 0
    %v106 = vsel %vm98, %v84, 0
    %v109 = vsel %vm98, %v85, 0
    %111 = vmatprep.subr.bf16.mxu0 0
    %112 = vmatpush1.bf16.msra.mxu0 0
    %113 = vmatprep.subr.bf16.mxu0 0
    %114 = vmatpush1.bf16.msra.mxu0 0
    %115 = vmatprep.subr.bf16.mxu0 0
    %116 = vmatpush1.bf16.msra.mxu0 0
    %117 = vmatprep.subr.bf16.mxu0 0
    %118 = vmatpush1.bf16.msra.mxu0 0
    %119 = vmatprep.subr.bf16.mxu0 0
    %120 = vmatpush1.bf16.msra.mxu0 0
    %121 = vmatprep.subr.bf16.mxu0 %v103
    %122 = vmatpush1.bf16.msra.mxu0 %v100
    %123 = vmatprep.subr.bf16.mxu0 %v79
    %124 = vmatpush1.bf16.msra.mxu0 %v78
    %125 = vmatprep.subr.bf16.mxu0 %v75
    %126 = vmatpush1.bf16.msra.mxu0 %v74
    %127 = vmatprep.subr.bf16.mxu0 0
    %128 = vmatpush2.bf16.msra.mxu0 0
    %129 = vmatprep.subr.bf16.mxu0 0
    %130 = vmatpush2.bf16.msra.mxu0 0
    %131 = vmatprep.subr.bf16.mxu0 0
    %132 = vmatpush2.bf16.msra.mxu0 0
    %133 = vmatprep.subr.bf16.mxu0 0
    %134 = vmatpush2.bf16.msra.mxu0 0
    %135 = vmatprep.subr.bf16.mxu0 0
    %136 = vmatpush2.bf16.msra.mxu0 0
    %137 = vmatprep.subr.bf16.mxu0 0
    %138 = vmatpush2.bf16.msra.mxu0 0
    %139 = vmatprep.subr.bf16.mxu0 0
    %140 = vmatpush2.bf16.msra.mxu0 0
    %141 = vmatprep.subr.bf16.mxu0 0
    %142 = vmatpush2.bf16.msra.mxu0 0
    %143 = vmatprep.mubr.bf16.mxu0 0
    %144 = vmatmul.mubr.bf16.gmra.mxu0 %v96
    %v145 = vpop.f32.mrf.mxu0
    %v146 = vadd.f32 0.0, %v145
    %v147 = vpop.f32.mrf.mxu0
    %v148 = vadd.f32 0.0, %v147
    %v149 = vpop.f32.mrf.mxu0
    %v150 = vpop.f32.mrf.mxu0
    %151 = vdwg.mxu0
    %152 = vmatprep.subr.bf16.mxu0 0
    %153 = vmatpush1.bf16.msra.mxu0 0
    %154 = vmatprep.subr.bf16.mxu0 0
    %155 = vmatpush1.bf16.msra.mxu0 0
    %156 = vmatprep.subr.bf16.mxu0 0
    %157 = vmatpush1.bf16.msra.mxu0 0
    %158 = vmatprep.subr.bf16.mxu0 0
    %159 = vmatpush1.bf16.msra.mxu0 0
    %160 = vmatprep.subr.bf16.mxu0 0
    %161 = vmatpush1.bf16.msra.mxu0 0
    %162 = vmatprep.subr.bf16.mxu0 %v109
    %163 = vmatpush1.bf16.msra.mxu0 %v106
    %164 = vmatprep.subr.bf16.mxu0 %v81
    %165 = vmatpush1.bf16.msra.mxu0 %v80
    %166 = vmatprep.subr.bf16.mxu0 %v77
    %167 = vmatpush1.bf16.msra.mxu0 %v76
    %168 = vmatprep.subr.bf16.mxu0 0
    %169 = vmatpush2.bf16.msra.mxu0 0
    %170 = vmatprep.subr.bf16.mxu0 0
    %171 = vmatpush2.bf16.msra.mxu0 0
    %172 = vmatprep.subr.bf16.mxu0 0
    %173 = vmatpush2.bf16.msra.mxu0 0
    %174 = vmatprep.subr.bf16.mxu0 0
    %175 = vmatpush2.bf16.msra.mxu0 0
    %176 = vmatprep.subr.bf16.mxu0 0
    %177 = vmatpush2.bf16.msra.mxu0 0
    %178 = vmatprep.subr.bf16.mxu0 0
    %179 = vmatpush2.bf16.msra.mxu0 0
    %180 = vmatprep.subr.bf16.mxu0 0
    %181 = vmatpush2.bf16.msra.mxu0 0
    %182 = vmatprep.subr.bf16.mxu0 0
    %183 = vmatpush2.bf16.msra.mxu0 0
    %184 = vmatprep.mubr.bf16.mxu0 0
    %185 = vmatmul.mubr.bf16.gmra.mxu0 %v96
    %v186 = vpop.f32.mrf.mxu0
    %v187 = vadd.f32 0.0, %v186
    %v188 = vpop.f32.mrf.mxu0
    %v189 = vadd.f32 0.0, %v188
    %v190 = vpop.f32.mrf.mxu0
    %v191 = vpop.f32.mrf.mxu0
    %192 = vdwg.mxu0
    %v193 = vadd.f32 %v146, %v148
    %v194 = vadd.f32 %v193, %v187
    %v195 = vadd.f32 %v194, %v189
    %196 = vadd.xlane.f32.xlu0 %v195
    %v197 = vpop.xlane.xlu0 %196
    %v198 = vrcp.pop 512.0
    %v199 = vmul.f32 %v197, %v198
    %v200 = vsub.f32 %v146, %v199
    %v201 = vsub.f32 %v148, %v199
    %v202 = vsub.f32 %v187, %v199
    %v203 = vsub.f32 %v189, %v199
    %v204 = vmul.f32 %v200, %v200
    %v205 = vmul.f32 %v201, %v201
    %v206 = vmul.f32 %v202, %v202
    %v207 = vmul.f32 %v203, %v203
    %v208 = vadd.f32 %v204, %v205
    %v209 = vadd.f32 %v208, %v206
    %v210 = vadd.f32 %v209, %v207
    %211 = vadd.xlane.f32.xlu0 %v210
    %v212 = vpop.xlane.xlu0 %211
    %v213 = vmul.f32 %v212, %v198
    %v214 = vld [vmem:[%s2] sm:$0xff]
    %v215 = vadd.f32 %v213, 1e-05
    %v216 = vrsqrt.pop %v215
    %v217 = vmul.f32 %v214, %v216
    %v218 = vld [vmem:[%s3] sm:$0xff]
    %v219 = vmul.f32 %v199, %v217
    %v220 = vsub.f32 %v218, %v219
    %222 = vset.pattern.permute.xlu0 0
    %223 = vperm.xlu0 %222, %v217
    %v224 = vpop.permute.xlu0 %223
    %v226 = vmul.f32 %v146, %v224
    %v227 = vmul.f32 %v148, %v224
    %v228 = vmul.f32 %v187, %v224
    %v229 = vmul.f32 %v189, %v224
    %231 = vset.pattern.permute.xlu0 0
    %232 = vperm.xlu0 %231, %v220
    %v233 = vpop.permute.xlu0 %232
    %v235 = vadd.f32 %v226, %v233
    %v236 = vadd.f32 %v227, %v233
    %v237 = vadd.f32 %v228, %v233
    %v238 = vadd.f32 %v229, %v233
    %v239 = vmin.f32 %v235, 0.0
    %v240 = vmin.f32 %v236, 0.0
    %v241 = vmin.f32 %v237, 0.0
    %v242 = vmin.f32 %v238, 0.0
    %v243 = vmul.f32 %v239, 0.16666667
    %v244 = vmul.f32 %v240, 0.16666667
    %v245 = vmul.f32 %v241, 0.16666667
    %v246 = vmul.f32 %v242, 0.16666667
    %v247 = vadd.f32 %v243, 0.5
    %v248 = vadd.f32 %v244, 0.5
    %v249 = vadd.f32 %v245, 0.5
    %v250 = vadd.f32 %v246, 0.5
    %v251 = vmul.f32 %v239, %v247
    %v252 = vmul.f32 %v240, %v248
    %v253 = vmul.f32 %v241, %v249
    %v254 = vmul.f32 %v242, %v250
    %v255 = vadd.f32 %v251, 1.0
    %v256 = vadd.f32 %v252, 1.0
    %v257 = vadd.f32 %v253, 1.0
    %v258 = vadd.f32 %v254, 1.0
    %v259 = vmul.f32 %v239, %v255
    %v260 = vmul.f32 %v240, %v256
    %v261 = vmul.f32 %v241, %v257
    %v262 = vmul.f32 %v242, %v258
    %vm263 = vcmp.gt.f32.partialorder %v239, -0.03
    %vm264 = vcmp.gt.f32.partialorder %v240, -0.03
    %vm265 = vcmp.gt.f32.partialorder %v241, -0.03
    %vm266 = vcmp.gt.f32.partialorder %v242, -0.03
    %v267 = vmul.f32 %v239, 1.442695
    %v268 = vpow.pop %v267
    %v269 = vmul.f32 %v240, 1.442695
    %v270 = vpow.pop %v269
    %v271 = vmul.f32 %v241, 1.442695
    %v272 = vpow.pop %v271
    %v273 = vmul.f32 %v242, 1.442695
    %v274 = vpow.pop %v273
    %v275 = vsub.f32 %v268, 1.0
    %v276 = vsub.f32 %v270, 1.0
    %v277 = vsub.f32 %v272, 1.0
    %v278 = vsub.f32 %v274, 1.0
    %v279 = vsel %vm263, %v259, %v275
    %v280 = vsel %vm264, %v260, %v276
    %v281 = vsel %vm265, %v261, %v277
    %v282 = vsel %vm266, %v262, %v278
    %vm283 = vcmp.gt.f32.partialorder %v235, 0.0
    %vm284 = vcmp.gt.f32.partialorder %v236, 0.0
    %vm285 = vcmp.gt.f32.partialorder %v237, 0.0
    %vm286 = vcmp.gt.f32.partialorder %v238, 0.0
    %v287 = vsel %vm283, %v235, %v279
    %v288 = vsel %vm284, %v236, %v280
    %v289 = vsel %vm285, %v237, %v281
    %v290 = vsel %vm286, %v238, %v282
    %291 = vst [vmem:[#allocation5] sm:$0xff] %v287
    %292 = vst [vmem:[#allocation5 + $0x8] sm:$0xff] %v288
    %293 = vst [vmem:[#allocation5 + $0x10] sm:$0xff] %v289
    %294 = vst [vmem:[#allocation5 + $0x18] sm:$0xff] %v290
    // Predicated region
    $region22: #{tpu_custom_call.1} parent=1 // pred_check
      _
    $region23: #{tpu_custom_call.1} parent=1 // pred_check_branch
      %296 = sbr.rel (0) target = $region25
    $region24: #{tpu_custom_call.1} parent=1 // pred_region
      %s298 = ssub.s32 512, 512
      %299 = vsyncadd [#allocation4], %s298
      %s301 = sshll.u32 [#allocation5], 4
      %s302 = int_to_ptr.vmem [resolvable:$true] %s301
      %304 = dma.vmem_to_hbm [thread:$0]  %s302, 512, %s4, [#allocation4]
    $region25: #{tpu_custom_call.1} parent=1 // pred_fallthru
      _
    // Predicated region
    $region26: #{tpu_custom_call.1} parent=1 // pred_check
      _
    $region27: #{tpu_custom_call.1} parent=1 // pred_check_branch
      %306 = sbr.rel (0) target = $region29
    $region28: #{tpu_custom_call.1} parent=1 // pred_region
      %307 = dma.done [#allocation4], 512
    $region29: #{tpu_custom_call.1} parent=1 // pred_fallthru
      _
    %308 = vsyncpa [#allocation3], 1
    %309 = vsyncpa [#allocation4], 1

</llo_original>
